<compile_context>
chip_gen: v7x
topology: tpu7x:2x2x1
jax: 0.10.0
libtpu: 0.0.40
codegen_flags: <defaults>
</compile_context>

<pallas_src>
import functools
import math

import jax
import jax.numpy as jnp
from jax.experimental import pallas as pl
from jax.experimental.pallas import tpu as pltpu


# ---------------------------------------------------------------------------
# Positional-encoding table (identical values to the PyTorch __init__).
# ---------------------------------------------------------------------------
def build_positional_encoding(d_model: int, max_len: int = 5000, dtype=jnp.float32):
    position = jnp.arange(0, max_len, dtype=jnp.float32)[:, None]           # (max_len, 1)
    div_term = jnp.exp(
        jnp.arange(0, d_model, 2, dtype=jnp.float32) * (-math.log(10000.0) / d_model)
    )                                                                        # (ceil(D/2),)
    angles = position * div_term                                             # (max_len, ceil(D/2))
    pe = jnp.zeros((max_len, d_model), dtype=jnp.float32)
    pe = pe.at[:, 0::2].set(jnp.sin(angles))
    pe = pe.at[:, 1::2].set(jnp.cos(angles)[:, : d_model // 2])
    return pe[:, None, :].astype(dtype)                                      # (max_len, 1, D)


# ---------------------------------------------------------------------------
# Sizing helpers (layout-aware VMEM accounting, per-generation budgets).
# ---------------------------------------------------------------------------
_LANE = 128


def _cdiv(a: int, b: int) -> int:
    return (a + b - 1) // b


def _round_up(x: int, m: int) -> int:
    return _cdiv(x, m) * m


def _sublanes(dtype) -> int:
    # Packed-dtype sublane count: f32 -> 8, bf16 -> 16, int8/fp8 -> 32.
    return max(8, 32 // jnp.dtype(dtype).itemsize)


def _vmem_budget_and_limit():
    """(per-step tile budget, vmem_limit_bytes) chosen per TPU generation."""
    mib = 1024 * 1024
    phys = None
    try:
        phys = getattr(pltpu.get_tpu_info(), "vmem_capacity_bytes", None)
    except Exception:
        phys = None
    if phys is not None and phys >= 128 * mib:
        # v5e / v6e: 128 MiB physical VMEM -> big streaming tiles.
        return 48 * mib, 64 * mib
    # v7x (64 MiB physical per TensorCore) or unknown generation: conservative,
    # leaving headroom for Mosaic internal scratch.
    return 32 * mib, 48 * mib


def _choose_seq_tile(S: int, per_row_bytes: int, sub: int, budget: int,
                     min_steps: int = 4) -> int:
    """Largest multiple-of-`sub` sequence tile whose pipelined (padded,
    double-buffered) footprint fits `budget`, capped so the grid has at least
    `min_steps` steps whenever S allows it (keeps both v7x TCs busy)."""
    t_budget = max(sub, (budget // max(per_row_bytes, 1)) // sub * sub)
    t_steps = max(sub, _round_up(_cdiv(S, min_steps), sub))
    t = min(t_budget, t_steps)
    # Never larger than the sublane-rounded sequence length.
    return min(t, _round_up(S, sub))


# ---------------------------------------------------------------------------
# Kernels.
# ---------------------------------------------------------------------------
def _pe_add_kernel_2d(x_ref, pe_ref, o_ref, *, reps: int):
    # x_ref/o_ref: (tS, B*D)   pe_ref: (tS, D)
    pe = pe_ref[...]
    if reps > 1:
        pe = jnp.tile(pe, (1, reps))          # lane-axis replication, hidden under DMA
    o_ref[...] = x_ref[...] + pe              # single full-width VPU add + dense store


def _pe_add_kernel_3d(x_ref, pe_ref, o_ref):
    # x_ref/o_ref: (tS, tB, D)   pe_ref: (tS, 1, D)  -> sublane broadcast over batch.
    o_ref[...] = x_ref[...] + pe_ref[...]


# ---------------------------------------------------------------------------
# Wrapper.
# ---------------------------------------------------------------------------
def positional_encoding_forward(x: jnp.ndarray, pe: jnp.ndarray) -> jnp.ndarray:
    """x: (S, B, D); pe: (max_len, 1, D).  Returns x + pe[:S] broadcast over batch.

    NOTE: the pallas_call aliases its output onto x's HBM buffer
    (input_output_aliases={0: 0}).  Call under jax.jit with donate_argnums=(0,)
    (as in __main__) so XLA does not insert a defensive copy of x; treat x as
    consumed after the call.
    """
    S, B, D = x.shape
    max_len = pe.shape[0]
    assert S <= max_len, f"sequence length {S} exceeds pe max_len {max_len}"
    if pe.dtype != x.dtype:
        pe = pe.astype(x.dtype)   # one-time cast outside the kernel

    itemsize = jnp.dtype(x.dtype).itemsize
    sub = _sublanes(x.dtype)
    budget, vmem_limit = _vmem_budget_and_limit()

    use_3d = (D % _LANE == 0) and (B >= sub)

    if not use_3d:
        # ---- Lane-dense 2-D path -------------------------------------------
        BD = B * D
        x2d = x.reshape(S, BD)                 # free contiguous view
        pe2d = pe.reshape(max_len, D)
        # Padded, double-buffered footprint per sequence row: x + out + pe blocks.
        per_row = itemsize * (4 * _round_up(BD, _LANE) + 2 * _round_up(D, _LANE))
        tS = _choose_seq_tile(S, per_row, sub, budget)
        grid = (_cdiv(S, tS),)

        out2d = pl.pallas_call(
            functools.partial(_pe_add_kernel_2d, reps=B),
            out_shape=jax.ShapeDtypeStruct((S, BD), x.dtype),
            grid_spec=pltpu.PrefetchScalarGridSpec(
                num_scalar_prefetch=0,
                grid=grid,
                in_specs=[
                    pl.BlockSpec((tS, BD), lambda i: (i, 0)),   # x seq tile
                    pl.BlockSpec((tS, D), lambda i: (i, 0)),    # pe[:S] window tile
                ],
                out_specs=pl.BlockSpec((tS, BD), lambda i: (i, 0)),
            ),
            input_output_aliases={0: 0},   # write result back into x's buffer
            compiler_params=pltpu.CompilerParams(
                dimension_semantics=("parallel",),
                vmem_limit_bytes=vmem_limit,
            ),
        )(x2d, pe2d)
        return out2d.reshape(S, B, D)

    # ---- 3-D path (D lane-aligned, B sublane-aligned) ------------------------
    def _per_row(tb: int) -> int:
        # x + out + pe blocks, double buffered, padded to (sublane, 128) tiles.
        return itemsize * _round_up(D, _LANE) * (4 * _round_up(tb, sub) + 2 * sub)

    # Split the batch axis if even the minimal seq tile would blow the budget.
    tB = B
    while tB > sub and sub * _per_row(tB) > budget:
        tB = max(sub, _round_up(tB // 2, sub))
    # TODO(synk): if even (tS=sub, tB=sub) exceeds the budget (enormous D), a
    # third grid axis over D would be needed; not expected for this module.

    tS = _choose_seq_tile(S, _per_row(tB), sub, budget)
    grid = (_cdiv(S, tS), _cdiv(B, tB))

    out = pl.pallas_call(
        _pe_add_kernel_3d,
        out_shape=jax.ShapeDtypeStruct((S, B, D), x.dtype),
        grid_spec=pltpu.PrefetchScalarGridSpec(
            num_scalar_prefetch=0,
            grid=grid,
            in_specs=[
                pl.BlockSpec((tS, tB, D), lambda i, j: (i, j, 0)),   # x tile
                pl.BlockSpec((tS, 1, D), lambda i, j: (i, 0, 0)),    # pe tile
            ],
            out_specs=pl.BlockSpec((tS, tB, D), lambda i, j: (i, j, 0)),
        ),
        input_output_aliases={0: 0},
        compiler_params=pltpu.CompilerParams(
            dimension_semantics=("parallel", "parallel"),
            vmem_limit_bytes=vmem_limit,
        ),
    )(x, pe)
    return out


if __name__ == "__main__":
    seq_len, batch, d_model = 8, 2, 32
    max_len = 64  # small max_len for the synthetic example

    key = jax.random.PRNGKey(0)
    x = jax.random.normal(key, (seq_len, batch, d_model), dtype=jnp.float32)
    pe = build_positional_encoding(d_model, max_len=max_len, dtype=jnp.float32)

    # Reference (mirrors the PyTorch forward).  Materialized BEFORE the kernel
    # call because x is donated below (its HBM buffer becomes the output).
    ref = jax.block_until_ready(x + pe[:seq_len])

    # Donate x at the jit boundary so input_output_aliases={0: 0} is honored
    # without a defensive copy.  x must not be read after this call.
    pos_enc = jax.jit(positional_encoding_forward, donate_argnums=(0,))
    out = jax.block_until_ready(pos_enc(x, pe))

    assert out.shape == (seq_len, batch, d_model)
    assert jnp.allclose(out, ref, atol=1e-6, rtol=1e-6), "mismatch vs reference"

    print("KERNEL_OK")
</pallas_src>

<mosaic_0001>
module attributes {stable_mosaic.version = 11 : i64} {
  func.func @_pe_add_kernel_2d(%arg0: i32, %arg1: memref<8x64xf32, #tpu.memory_space<vmem>>, %arg2: memref<8x32xf32, #tpu.memory_space<vmem>>, %arg3: memref<8x64xf32, #tpu.memory_space<vmem>>) attributes {dimension_semantics = [#tpu.dimension_semantics<parallel>], iteration_bounds = array<i64: 1>, scalar_prefetch = 0 : i64, scratch_operands = 0 : i64, tpu.core_type = #tpu.core_type<tc>, window_params = [{transform_indices = @transform_0, window_bounds = array<i64: 8, 64>}, {transform_indices = @transform_1, window_bounds = array<i64: 8, 32>}, {transform_indices = @transform_2, window_bounds = array<i64: 8, 64>}]} {
    %c0 = arith.constant 0 : index
    %c0_0 = arith.constant 0 : index
    %0 = vector.load %arg2[%c0, %c0_0] : memref<8x32xf32, #tpu.memory_space<vmem>>, vector<8x32xf32>
    %1 = tpu.concatenate %0, %0 in 1 : vector<8x32xf32>, vector<8x32xf32> -> vector<8x64xf32>
    %c0_1 = arith.constant 0 : index
    %c0_2 = arith.constant 0 : index
    %2 = vector.load %arg1[%c0_1, %c0_2] : memref<8x64xf32, #tpu.memory_space<vmem>>, vector<8x64xf32>
    %3 = arith.addf %2, %1 : vector<8x64xf32>
    %c0_3 = arith.constant 0 : index
    %c0_4 = arith.constant 0 : index
    %4 = vector.load %arg3[%c0_3, %c0_4] : memref<8x64xf32, #tpu.memory_space<vmem>>, vector<8x64xf32>
    tpu.vector_store %arg3[%c0_3, %c0_4], %3 {strides = array<i32>} : memref<8x64xf32, #tpu.memory_space<vmem>>, vector<8x64xf32>,
    return
  }
  func.func @transform_0(%arg0: i32) -> (i32, i32) {
    %c0_i32 = arith.constant 0 : i32
    %c0_i32_0 = arith.constant 0 : i32
    return %arg0, %c0_i32 : i32, i32
  }
  func.func @transform_1(%arg0: i32) -> (i32, i32) {
    %c0_i32 = arith.constant 0 : i32
    %c0_i32_0 = arith.constant 0 : i32
    return %arg0, %c0_i32 : i32, i32
  }
  func.func @transform_2(%arg0: i32) -> (i32, i32) {
    %c0_i32 = arith.constant 0 : i32
    %c0_i32_0 = arith.constant 0 : i32
    return %arg0, %c0_i32 : i32, i32
  }
}

</mosaic_0001>

<llo_original>
// kernel: positional_encoding_forward.1
$region0: #{positional_encoding_forward.1}
  #allocation0 [shape = 'u32[]', space=smem, size = 0x4, offset = 0x4, fixed_abs, tag = 'smem constant byte address 0x4 - core index']
  #allocation1 [shape = 'u32[144,128]{1,0:T(1,128)}', space=vmem, size = 0x12000, scoped, tag = 'internal scratch']
  %s0 = inlined_call_operand.vmem [shape: f32[8,64], index: 0, kind: input, shape index: {}, may-alias: {0,2}]
  %s1 = inlined_call_operand.vmem [shape: f32[64,32], index: 1, kind: input, shape index: {}]
  %s2 = inlined_call_operand.vmem [shape: f32[8,64], index: 2, kind: output, shape index: {}, may-alias: {0,2}]
  %s3 = sld [smem:[#allocation0]]
  $region18: #{positional_encoding_forward.1} parent=0
    _
  %s5 = ssub.s32 1, %s3
  %s6 = scalar_select 0, %s5, %s3
  // Predicated region
  $region2: #{positional_encoding_forward.1} parent=0 // pred_check
    _
  $region3: #{positional_encoding_forward.1} parent=0 // pred_check_branch
    %8 = sbr.rel (0) target = $region5
  $region4: #{positional_encoding_forward.1} parent=0 // pred_region
    _
  $region5: #{positional_encoding_forward.1} parent=0 // pred_fallthru
    _
  // Predicated region
  $region6: #{positional_encoding_forward.1} parent=0 // pred_check
    _
  $region7: #{positional_encoding_forward.1} parent=0 // pred_check_branch
    %10 = sbr.rel (0) target = $region9
  $region8: #{positional_encoding_forward.1} parent=0 // pred_region
    _
  $region9: #{positional_encoding_forward.1} parent=0 // pred_fallthru
    _
  %v11 = vld [vmem:[%s1] sm:$0xff]
  %13 = vrot.lane.b32.xlu0 %v11, 32
  %v14 = vpop.permute.xlu0 %13
  %vm16 = vcmask 261120
  %v17 = vsel %vm16, %v11, %v14
  %v18 = vld [vmem:[%s0] sm:$0xff]
  %v19 = vadd.f32 %v18, %v17
  %vm20 = vcmask 523264
  %21 = vst.msk [vmem:[%s2] sm:$0xff] %vm20, %v19
  // Predicated region
  $region10: #{positional_encoding_forward.1} parent=0 // pred_check
    _
  $region11: #{positional_encoding_forward.1} parent=0 // pred_check_branch
    %23 = sbr.rel (0) target = $region13
  $region12: #{positional_encoding_forward.1} parent=0 // pred_region
    _
  $region13: #{positional_encoding_forward.1} parent=0 // pred_fallthru
    _
  // Predicated region
  $region14: #{positional_encoding_forward.1} parent=0 // pred_check
    _
  $region15: #{positional_encoding_forward.1} parent=0 // pred_check_branch
    %25 = sbr.rel (0) target = $region17
  $region16: #{positional_encoding_forward.1} parent=0 // pred_region
    _
  $region17: #{positional_encoding_forward.1} parent=0 // pred_fallthru
    _

</llo_original>
